<compile_context>
chip_gen: v6e
topology: v6e:2x2x1
jax: 0.10.0
libtpu: 0.0.40
codegen_flags: <defaults>
</compile_context>

<pallas_src>
import functools

import jax
import jax.numpy as jnp
from jax.experimental import pallas as pl
from jax.experimental.pallas import tpu as pltpu


def _round_up(x, m):
    return ((x + m - 1) // m) * m


def _cov_tile_kernel(mean_ref, xr_ref, xc_ref, o_ref, *, inv_n, center, compute_dtype):
    # mean_ref: (bb, 1, 1) f32 per-batch scalar means
    # xr_ref  : (bb, d, TI) row-block slab of x
    # xc_ref  : (bb, d, TJ) column-block slab of x
    # o_ref   : (bb, TI, TJ) covariance tile
    xr = xr_ref[...].astype(jnp.float32)
    xc = xc_ref[...].astype(jnp.float32)
    if center:
        m = mean_ref[...]                 # (bb, 1, 1) broadcasts over (bb, d, T)
        xr = xr - m
        xc = xc - m
    # Batched contraction over the feature dim d; bf16 operands feed the MXU
    # natively, accumulation stays f32.
    gram = jnp.einsum(
        "bdi,bdj->bij",
        xr.astype(compute_dtype),
        xc.astype(compute_dtype),
        preferred_element_type=jnp.float32,
    )
    o_ref[...] = (gram * inv_n).astype(o_ref.dtype)


def _footprint_bytes(bb, tile, d, in_itemsize, out_itemsize):
    # Double-buffered per-step block footprint (row slab + col slab + output tile).
    in_b = bb * 2 * d * tile * in_itemsize
    out_b = bb * tile * tile * out_itemsize
    mean_b = bb * 4
    return 2 * (in_b + out_b + mean_b)


def covariance(x, remove_mean=True, *, tile_n=512, batch_block=None,
               compute_dtype=jnp.bfloat16, out_dtype=jnp.float32):
    """Pallas equivalent of Covariance(remove_mean=remove_mean, conv=False)(x).

    x: (B, d, N) float array.  Returns (B, N, N) in `out_dtype`.
    """
    assert x.ndim == 3
    B, d, N = x.shape
    in_itemsize = jnp.dtype(x.dtype).itemsize
    out_itemsize = jnp.dtype(out_dtype).itemsize
    budget = 10 * 2**20  # conservative double-buffered block budget (fits v7x VMEM)

    # Per-batch scalar mean (the adaptive_avg_pool2d((1,1))-on-3D quirk of the
    # PyTorch module), precomputed as a tiny XLA reduction.
    if remove_mean:
        means = jnp.mean(x.astype(jnp.float32), axis=(1, 2))
    else:
        means = jnp.zeros((B,), jnp.float32)
    means = means.reshape(B, 1, 1)

    # Lane-dense tiling: pad N up to a multiple of 128, pick the largest 128-multiple
    # tile that divides the padded N and fits the VMEM budget (minimizes padding and
    # keeps output stores unmasked).
    n_pad = _round_up(N, 128)
    tile = 128
    t_max = int(min(tile_n, n_pad))
    t = (t_max // 128) * 128
    while t >= 128:
        if n_pad % t == 0 and _footprint_bytes(1, t, d, in_itemsize, out_itemsize) <= budget:
            tile = t
            break
        t -= 128
    x_p = x if n_pad == N else jnp.pad(x, ((0, 0), (0, 0), (0, n_pad - N)))

    # Batches per grid step: amortize per-step overhead at small shapes while
    # keeping the double-buffered footprint within budget.
    if batch_block is None:
        batch_block = 1
        for cand in (8, 4, 2):
            if B % cand == 0 and _footprint_bytes(cand, tile, d, in_itemsize, out_itemsize) <= budget:
                batch_block = cand
                break
    bb = int(batch_block)
    assert B % bb == 0, "batch_block must divide the batch size"

    grid = (B // bb, n_pad // tile, n_pad // tile)

    # Explicit scoped-VMEM limit: comfortably above the block footprint, safely
    # under every chip's physical VMEM (v7x: 64 MiB).
    vmem_limit = int(min(64 * 2**20,
                         max(32 * 2**20,
                             2 * _footprint_bytes(bb, tile, d, in_itemsize, out_itemsize))))

    kernel = functools.partial(
        _cov_tile_kernel, inv_n=1.0 / N, center=bool(remove_mean),
        compute_dtype=compute_dtype)

    out = pl.pallas_call(
        kernel,
        out_shape=jax.ShapeDtypeStruct((B, n_pad, n_pad), out_dtype),
        grid_spec=pltpu.PrefetchScalarGridSpec(
            num_scalar_prefetch=0,
            grid=grid,
            in_specs=[
                pl.BlockSpec((bb, 1, 1), lambda b, i, j: (b, 0, 0)),      # means
                pl.BlockSpec((bb, d, tile), lambda b, i, j: (b, 0, i)),   # row slab
                pl.BlockSpec((bb, d, tile), lambda b, i, j: (b, 0, j)),   # col slab
            ],
            out_specs=pl.BlockSpec((bb, tile, tile), lambda b, i, j: (b, i, j)),
        ),
        compiler_params=pltpu.CompilerParams(
            dimension_semantics=("parallel", "parallel", "parallel"),
            vmem_limit_bytes=vmem_limit,
        ),
    )(means, x_p, x_p)

    if n_pad != N:
        out = out[:, :N, :N]
    return out


def _covariance_ref(x, remove_mean=True):
    # Pure-JAX reference reproducing the PyTorch module exactly (f32 throughout).
    B, d, N = x.shape
    xf = x.astype(jnp.float32)
    if remove_mean:
        xf = xf - jnp.mean(xf, axis=(1, 2), keepdims=True)   # scalar per batch
    xt = jnp.swapaxes(xf, -1, -2)                             # (B, N, d)
    return (1.0 / N) * jnp.einsum("bnd,bmd->bnm", xt, xt)


if __name__ == "__main__":
    key = jax.random.PRNGKey(0)

    # Case 1: aligned N, remove_mean=True (default module config).
    B, d, N = 2, 32, 128
    x1 = jax.random.normal(key, (B, d, N), dtype=jnp.float32)
    out1 = jax.block_until_ready(covariance(x1, remove_mean=True))
    ref1 = _covariance_ref(x1, remove_mean=True)
    assert out1.shape == (B, N, N)
    assert jnp.allclose(out1, ref1, atol=3e-2, rtol=3e-2), "mismatch (case 1)"

    # Case 2: unaligned N (exercises padding / slicing), remove_mean=True.
    B2, d2, N2 = 2, 24, 160
    x2 = jax.random.normal(jax.random.PRNGKey(1), (B2, d2, N2), dtype=jnp.float32)
    out2 = jax.block_until_ready(covariance(x2, remove_mean=True))
    ref2 = _covariance_ref(x2, remove_mean=True)
    assert out2.shape == (B2, N2, N2)
    assert jnp.allclose(out2, ref2, atol=3e-2, rtol=3e-2), "mismatch (case 2)"

    # Case 3: remove_mean=False.
    out3 = jax.block_until_ready(covariance(x1, remove_mean=False))
    ref3 = _covariance_ref(x1, remove_mean=False)
    assert jnp.allclose(out3, ref3, atol=3e-2, rtol=3e-2), "mismatch (case 3)"

    print("KERNEL_OK")
</pallas_src>

<mosaic_0001>
module attributes {stable_mosaic.version = 11 : i64} {
  func.func @_cov_tile_kernel(%arg0: i32, %arg1: i32, %arg2: i32, %arg3: memref<2x1x1xf32, #tpu.memory_space<vmem>>, %arg4: memref<2x32x128xf32, #tpu.memory_space<vmem>>, %arg5: memref<2x32x128xf32, #tpu.memory_space<vmem>>, %arg6: memref<2x128x128xf32, #tpu.memory_space<vmem>>) attributes {dimension_semantics = [#tpu.dimension_semantics<parallel>, #tpu.dimension_semantics<parallel>, #tpu.dimension_semantics<parallel>], iteration_bounds = array<i64: 1, 1, 1>, scalar_prefetch = 0 : i64, scratch_operands = 0 : i64, tpu.core_type = #tpu.core_type<tc>, window_params = [{transform_indices = @transform_0, window_bounds = array<i64: 2, 1, 1>}, {transform_indices = @transform_1, window_bounds = array<i64: 2, 32, 128>}, {transform_indices = @transform_2, window_bounds = array<i64: 2, 32, 128>}, {transform_indices = @transform_3, window_bounds = array<i64: 2, 128, 128>}]} {
    %c0 = arith.constant 0 : index
    %c0_0 = arith.constant 0 : index
    %c0_1 = arith.constant 0 : index
    %0 = vector.load %arg4[%c0, %c0_0, %c0_1] : memref<2x32x128xf32, #tpu.memory_space<vmem>>, vector<2x32x128xf32>
    %c0_2 = arith.constant 0 : index
    %c0_3 = arith.constant 0 : index
    %c0_4 = arith.constant 0 : index
    %1 = vector.load %arg5[%c0_2, %c0_3, %c0_4] : memref<2x32x128xf32, #tpu.memory_space<vmem>>, vector<2x32x128xf32>
    %c0_5 = arith.constant 0 : index
    %c0_6 = arith.constant 0 : index
    %c0_7 = arith.constant 0 : index
    %2 = vector.load %arg3[%c0_5, %c0_6, %c0_7] : memref<2x1x1xf32, #tpu.memory_space<vmem>>, vector<2x1x1xf32>
    %3 = vector.broadcast %2 : vector<2x1x1xf32> to vector<2x32x128xf32>
    %4 = arith.subf %0, %3 : vector<2x32x128xf32>
    %5 = vector.broadcast %2 : vector<2x1x1xf32> to vector<2x32x128xf32>
    %6 = arith.subf %1, %5 : vector<2x32x128xf32>
    %7 = arith.truncf %4 : vector<2x32x128xf32> to vector<2x32x128xbf16>
    %8 = arith.truncf %6 : vector<2x32x128xf32> to vector<2x32x128xbf16>
    "tpu.trace_start"() <{level = 10 : i32, message = "bdi,bdj->bij"}> : () -> ()
    %cst = arith.constant dense<0.000000e+00> : vector<2x128x128xf32>
    %9 = tpu.matmul %7, %8, %cst {dimension_numbers = #tpu.dot_dimension_numbers<[1], [1], [2], [2], [0, 0, 0, 2, 1, 2], [0], [0]>} : vector<2x32x128xbf16>, vector<2x32x128xbf16>, vector<2x128x128xf32> -> vector<2x128x128xf32>
    "tpu.trace_stop"() : () -> ()
    %cst_8 = arith.constant 7.812500e-03 : f32
    %10 = vector.broadcast %cst_8 : f32 to vector<2x128x128xf32>
    %11 = arith.mulf %9, %10 : vector<2x128x128xf32>
    %c0_9 = arith.constant 0 : index
    %c0_10 = arith.constant 0 : index
    %c0_11 = arith.constant 0 : index
    %12 = vector.load %arg6[%c0_9, %c0_10, %c0_11] : memref<2x128x128xf32, #tpu.memory_space<vmem>>, vector<2x128x128xf32>
    tpu.vector_store %arg6[%c0_9, %c0_10, %c0_11], %11 {strides = array<i32>} : memref<2x128x128xf32, #tpu.memory_space<vmem>>, vector<2x128x128xf32>,
    return
  }
  func.func @transform_0(%arg0: i32, %arg1: i32, %arg2: i32) -> (i32, i32, i32) {
    %c0_i32 = arith.constant 0 : i32
    %c0_i32_0 = arith.constant 0 : i32
    %c0_i32_1 = arith.constant 0 : i32
    return %arg0, %c0_i32, %c0_i32_0 : i32, i32, i32
  }
  func.func @transform_1(%arg0: i32, %arg1: i32, %arg2: i32) -> (i32, i32, i32) {
    %c0_i32 = arith.constant 0 : i32
    %c0_i32_0 = arith.constant 0 : i32
    return %arg0, %c0_i32, %arg1 : i32, i32, i32
  }
  func.func @transform_2(%arg0: i32, %arg1: i32, %arg2: i32) -> (i32, i32, i32) {
    %c0_i32 = arith.constant 0 : i32
    %c0_i32_0 = arith.constant 0 : i32
    return %arg0, %c0_i32, %arg2 : i32, i32, i32
  }
  func.func @transform_3(%arg0: i32, %arg1: i32, %arg2: i32) -> (i32, i32, i32) {
    %c0_i32 = arith.constant 0 : i32
    return %arg0, %arg1, %arg2 : i32, i32, i32
  }
}

</mosaic_0001>

<llo_original>
// kernel: tpu_custom_call.1
$region0: #{tpu_custom_call.1}
  #allocation0 [shape = 'u32[]', space=smem, size = 0x4, offset = 0x4, fixed_abs, tag = 'smem constant byte address 0x4 - core index']
  #allocation1 [shape = 'u32[144,128]{1,0:T(1,128)}', space=vmem, size = 0x12000, scoped, tag = 'internal scratch']
  %s0 = inlined_call_operand.vmem [shape: f32[2,1,1], index: 0, kind: input, shape index: {}]
  %s1 = inlined_call_operand.hbm [shape: f32[2,32,128], index: 1, kind: input, shape index: {}]
  %s2 = inlined_call_operand.hbm [shape: f32[2,32,128], index: 2, kind: input, shape index: {}]
  %s3 = inlined_call_operand.hbm [shape: f32[2,128,128], index: 3, kind: output, shape index: {}]
  %s4 = sld [smem:[#allocation0]]
  $region30: #{tpu_custom_call.1} parent=0
    _
  %s6 = ssub.s32 1, %s4
  %s7 = scalar_select 0, %s6, %s4
  $region1: #{tpu_custom_call.1} parent=0
    #allocation2 [shape = 'u8[32768]{0}', space=vmem, size = 0x8000, scoped, tag = 'input window, operand 1, single buffered']
    #allocation3 [shape = 's32[1]{0}', space=sflag, size = 0x4, scoped, tag = 'scoped memory for tpu_custom_call.1']
    #allocation4 [shape = 's32[1]{0}', space=sflag, size = 0x4, scoped, tag = 'scoped memory for tpu_custom_call.1']
    #allocation5 [shape = 'u8[32768]{0}', space=vmem, size = 0x8000, scoped, tag = 'input window, operand 2, single buffered']
    #allocation6 [shape = 's32[1]{0}', space=sflag, size = 0x4, scoped, tag = 'scoped memory for tpu_custom_call.1']
    #allocation7 [shape = 'u8[131072]{0}', space=vmem, size = 0x20000, scoped, tag = 'output window, operand 0, single buffered']
    %8 = vsyncpa [#allocation3], 0
    %9 = vsyncpa [#allocation6], 0
    %10 = vsyncpa [#allocation4], 0
    // Predicated region
    $region2: #{tpu_custom_call.1} parent=1 // pred_check
      _
    $region3: #{tpu_custom_call.1} parent=1 // pred_check_branch
      %12 = sbr.rel (0) target = $region5
    $region4: #{tpu_custom_call.1} parent=1 // pred_region
      _
    $region5: #{tpu_custom_call.1} parent=1 // pred_fallthru
      _
    // Predicated region
    $region6: #{tpu_custom_call.1} parent=1 // pred_check
      _
    $region7: #{tpu_custom_call.1} parent=1 // pred_check_branch
      %14 = sbr.rel (0) target = $region9
    $region8: #{tpu_custom_call.1} parent=1 // pred_region
      %s16 = ssub.s32 1024, 1024
      %17 = vsyncadd [#allocation3], %s16
      %s18 = sshll.u32 [#allocation2], 4
      %s19 = int_to_ptr.vmem [resolvable:$true] %s18
      %24 = dma.hbm_to_vmem [thread:$0]  %s1, 1024, %s19, [#allocation3], 128, 128, 8
    $region9: #{tpu_custom_call.1} parent=1 // pred_fallthru
      _
    // Predicated region
    $region10: #{tpu_custom_call.1} parent=1 // pred_check
      _
    $region11: #{tpu_custom_call.1} parent=1 // pred_check_branch
      %26 = sbr.rel (0) target = $region13
    $region12: #{tpu_custom_call.1} parent=1 // pred_region
      %s28 = ssub.s32 1024, 1024
      %29 = vsyncadd [#allocation6], %s28
      %s30 = sshll.u32 [#allocation5], 4
      %s31 = int_to_ptr.vmem [resolvable:$true] %s30
      %36 = dma.hbm_to_vmem [thread:$0]  %s2, 1024, %s31, [#allocation6], 128, 128, 8
    $region13: #{tpu_custom_call.1} parent=1 // pred_fallthru
      _
    // Predicated region
    $region14: #{tpu_custom_call.1} parent=1 // pred_check
      _
    $region15: #{tpu_custom_call.1} parent=1 // pred_check_branch
      %38 = sbr.rel (0) target = $region17
    $region16: #{tpu_custom_call.1} parent=1 // pred_region
      %39 = dma.done [#allocation3], 1024
    $region17: #{tpu_custom_call.1} parent=1 // pred_fallthru
      _
    // Predicated region
    $region18: #{tpu_custom_call.1} parent=1 // pred_check
      _
    $region19: #{tpu_custom_call.1} parent=1 // pred_check_branch
      %41 = sbr.rel (0) target = $region21
    $region20: #{tpu_custom_call.1} parent=1 // pred_region
      %42 = dma.done [#allocation6], 1024
    $region21: #{tpu_custom_call.1} parent=1 // pred_fallthru
      _
    %v44 = vld [vmem:[#allocation2] sm:$0xff]
    %v45 = vld [vmem:[#allocation2 + $0x8] sm:$0xff]
    %v46 = vld [vmem:[#allocation2 + $0x10] sm:$0xff]
    %v47 = vld [vmem:[#allocation2 + $0x18] sm:$0xff]
    %v48 = vld [vmem:[#allocation2 + $0x20] sm:$0xff]
    %v49 = vld [vmem:[#allocation2 + $0x28] sm:$0xff]
    %v50 = vld [vmem:[#allocation2 + $0x30] sm:$0xff]
    %v51 = vld [vmem:[#allocation2 + $0x38] sm:$0xff]
    %v52 = vld [vmem:[#allocation5] sm:$0xff]
    %v53 = vld [vmem:[#allocation5 + $0x8] sm:$0xff]
    %v54 = vld [vmem:[#allocation5 + $0x10] sm:$0xff]
    %v55 = vld [vmem:[#allocation5 + $0x18] sm:$0xff]
    %v56 = vld [vmem:[#allocation5 + $0x20] sm:$0xff]
    %v57 = vld [vmem:[#allocation5 + $0x28] sm:$0xff]
    %v58 = vld [vmem:[#allocation5 + $0x30] sm:$0xff]
    %v59 = vld [vmem:[#allocation5 + $0x38] sm:$0xff]
    %v60 = vld [vmem:[%s0] sm:$0x1]
    %v61 = vld [vmem:[%s0 + $0x1] sm:$0x1]
    %v64 = vlaneseq
    %v65 = vshrl.u32 %v64, 7
    %v66 = vsub.s32 0, %v65
    %v67 = vrot.slane %v60, %v66
    %v68 = vlaneseq
    %v69 = vshrl.u32 %v68, 7
    %v70 = vsub.s32 0, %v69
    %v71 = vrot.slane %v61, %v70
    %72 = vset.pattern.permute.xlu0 0
    %73 = vperm.xlu0 %72, %v67
    %v74 = vpop.permute.xlu0 %73
    %76 = vset.pattern.permute.xlu0 0
    %77 = vperm.xlu0 %76, %v71
    %v78 = vpop.permute.xlu0 %77
    %v80 = vsub.f32 %v44, %v74
    %v81 = vsub.f32 %v45, %v74
    %v82 = vsub.f32 %v46, %v74
    %v83 = vsub.f32 %v47, %v74
    %v84 = vsub.f32 %v48, %v78
    %v85 = vsub.f32 %v49, %v78
    %v86 = vsub.f32 %v50, %v78
    %v87 = vsub.f32 %v51, %v78
    %v88 = vsub.f32 %v52, %v74
    %v89 = vsub.f32 %v53, %v74
    %v90 = vsub.f32 %v54, %v74
    %v91 = vsub.f32 %v55, %v74
    %v92 = vsub.f32 %v56, %v78
    %v93 = vsub.f32 %v57, %v78
    %v94 = vsub.f32 %v58, %v78
    %v95 = vsub.f32 %v59, %v78
    %v96 = vpack.c.bf16 %v81, %v80
    %v97 = vpack.c.bf16 %v83, %v82
    %v98 = vpack.c.bf16 %v85, %v84
    %v99 = vpack.c.bf16 %v87, %v86
    %v100 = vpack.c.bf16 %v89, %v88
    %v101 = vpack.c.bf16 %v91, %v90
    %v102 = vpack.c.bf16 %v93, %v92
    %v103 = vpack.c.bf16 %v95, %v94
    %104 = vxpose.xlu0.c.b16.start [1/8] %v96, 128
    %105 = vxpose.xlu0.c.b16.cont [2/8] %v97, 128
    %106 = vxpose.xlu0.c.b16.cont [3/8] 0, 128
    %107 = vxpose.xlu0.c.b16.cont [4/8] 0, 128
    %108 = vxpose.xlu0.c.b16.cont [5/8] 0, 128
    %109 = vxpose.xlu0.c.b16.cont [6/8] 0, 128
    %110 = vxpose.xlu0.c.b16.cont [7/8] 0, 128
    %111 = vxpose.xlu0.c.b16.end [8/8] 0, 128
    %v112 = vpop.trf.xlu0
    %v113 = vpop.trf.xlu0
    %v114 = vpop.trf.xlu0
    %v115 = vpop.trf.xlu0
    %v116 = vpop.trf.xlu0
    %v117 = vpop.trf.xlu0
    %v118 = vpop.trf.xlu0
    %v119 = vpop.trf.xlu0
    %vm120 = vcmask 261120
    %v122 = vsel %vm120, %v112, 0
    %v125 = vsel %vm120, %v113, 0
    %v128 = vsel %vm120, %v114, 0
    %v131 = vsel %vm120, %v115, 0
    %v134 = vsel %vm120, %v116, 0
    %v137 = vsel %vm120, %v117, 0
    %v140 = vsel %vm120, %v118, 0
    %v143 = vsel %vm120, %v119, 0
    %145 = vmatprep.subr.bf16.mxu0 0
    %146 = vmatpush1.bf16.msra.mxu0 0
    %147 = vmatprep.subr.bf16.mxu0 0
    %148 = vmatpush1.bf16.msra.mxu0 0
    %149 = vmatprep.subr.bf16.mxu0 0
    %150 = vmatpush1.bf16.msra.mxu0 0
    %151 = vmatprep.subr.bf16.mxu0 0
    %152 = vmatpush1.bf16.msra.mxu0 0
    %153 = vmatprep.subr.bf16.mxu0 0
    %154 = vmatpush1.bf16.msra.mxu0 0
    %155 = vmatprep.subr.bf16.mxu0 0
    %156 = vmatpush1.bf16.msra.mxu0 0
    %157 = vmatprep.subr.bf16.mxu0 0
    %158 = vmatpush1.bf16.msra.mxu0 %v101
    %159 = vmatprep.subr.bf16.mxu0 0
    %160 = vmatpush1.bf16.msra.mxu0 %v100
    %161 = vmatprep.subr.bf16.mxu0 0
    %162 = vmatpush2.bf16.msra.mxu0 0
    %163 = vmatprep.subr.bf16.mxu0 0
    %164 = vmatpush2.bf16.msra.mxu0 0
    %165 = vmatprep.subr.bf16.mxu0 0
    %166 = vmatpush2.bf16.msra.mxu0 0
    %167 = vmatprep.subr.bf16.mxu0 0
    %168 = vmatpush2.bf16.msra.mxu0 0
    %169 = vmatprep.subr.bf16.mxu0 0
    %170 = vmatpush2.bf16.msra.mxu0 0
    %171 = vmatprep.subr.bf16.mxu0 0
    %172 = vmatpush2.bf16.msra.mxu0 0
    %173 = vmatprep.subr.bf16.mxu0 0
    %174 = vmatpush2.bf16.msra.mxu0 0
    %175 = vmatprep.subr.bf16.mxu0 0
    %176 = vmatpush2.bf16.msra.mxu0 0
    %177 = vmatprep.mubr.bf16.mxu0 0
    %178 = vmatmul.mubr.bf16.gmra.mxu0 %v122
    %v179 = vpop.f32.mrf.mxu0
    %v180 = vadd.f32 0.0, %v179
    %v181 = vpop.f32.mrf.mxu0
    %v182 = vpop.f32.mrf.mxu0
    %v183 = vadd.f32 0.0, %v182
    %v184 = vpop.f32.mrf.mxu0
    %185 = vmatprep.mubr.bf16.mxu0 0
    %186 = vmatmul.mubr.bf16.gmra.mxu0 %v125
    %v187 = vpop.f32.mrf.mxu0
    %v188 = vadd.f32 0.0, %v187
    %v189 = vpop.f32.mrf.mxu0
    %v190 = vpop.f32.mrf.mxu0
    %v191 = vadd.f32 0.0, %v190
    %v192 = vpop.f32.mrf.mxu0
    %193 = vmatprep.mubr.bf16.mxu0 0
    %194 = vmatmul.mubr.bf16.gmra.mxu0 %v128
    %v195 = vpop.f32.mrf.mxu0
    %v196 = vadd.f32 0.0, %v195
    %v197 = vpop.f32.mrf.mxu0
    %v198 = vpop.f32.mrf.mxu0
    %v199 = vadd.f32 0.0, %v198
    %v200 = vpop.f32.mrf.mxu0
    %201 = vmatprep.mubr.bf16.mxu0 0
    %202 = vmatmul.mubr.bf16.gmra.mxu0 %v131
    %v203 = vpop.f32.mrf.mxu0
    %v204 = vadd.f32 0.0, %v203
    %v205 = vpop.f32.mrf.mxu0
    %v206 = vpop.f32.mrf.mxu0
    %v207 = vadd.f32 0.0, %v206
    %v208 = vpop.f32.mrf.mxu0
    %209 = vmatprep.mubr.bf16.mxu0 0
    %210 = vmatmul.mubr.bf16.gmra.mxu0 %v134
    %v211 = vpop.f32.mrf.mxu0
    %v212 = vadd.f32 0.0, %v211
    %v213 = vpop.f32.mrf.mxu0
    %v214 = vpop.f32.mrf.mxu0
    %v215 = vadd.f32 0.0, %v214
    %v216 = vpop.f32.mrf.mxu0
    %217 = vmatprep.mubr.bf16.mxu0 0
    %218 = vmatmul.mubr.bf16.gmra.mxu0 %v137
    %v219 = vpop.f32.mrf.mxu0
    %v220 = vadd.f32 0.0, %v219
    %v221 = vpop.f32.mrf.mxu0
    %v222 = vpop.f32.mrf.mxu0
    %v223 = vadd.f32 0.0, %v222
    %v224 = vpop.f32.mrf.mxu0
    %225 = vmatprep.mubr.bf16.mxu0 0
    %226 = vmatmul.mubr.bf16.gmra.mxu0 %v140
    %v227 = vpop.f32.mrf.mxu0
    %v228 = vadd.f32 0.0, %v227
    %v229 = vpop.f32.mrf.mxu0
    %v230 = vpop.f32.mrf.mxu0
    %v231 = vadd.f32 0.0, %v230
    %v232 = vpop.f32.mrf.mxu0
    %233 = vmatprep.mubr.bf16.mxu0 0
    %234 = vmatmul.mubr.bf16.gmra.mxu0 %v143
    %v235 = vpop.f32.mrf.mxu0
    %v236 = vadd.f32 0.0, %v235
    %v237 = vpop.f32.mrf.mxu0
    %v238 = vpop.f32.mrf.mxu0
    %v239 = vadd.f32 0.0, %v238
    %v240 = vpop.f32.mrf.mxu0
    %241 = vdwg.mxu0
    %242 = vxpose.xlu0.c.b16.start [1/8] %v98, 128
    %243 = vxpose.xlu0.c.b16.cont [2/8] %v99, 128
    %244 = vxpose.xlu0.c.b16.cont [3/8] 0, 128
    %245 = vxpose.xlu0.c.b16.cont [4/8] 0, 128
    %246 = vxpose.xlu0.c.b16.cont [5/8] 0, 128
    %247 = vxpose.xlu0.c.b16.cont [6/8] 0, 128
    %248 = vxpose.xlu0.c.b16.cont [7/8] 0, 128
    %249 = vxpose.xlu0.c.b16.end [8/8] 0, 128
    %v250 = vpop.trf.xlu0
    %v251 = vpop.trf.xlu0
    %v252 = vpop.trf.xlu0
    %v253 = vpop.trf.xlu0
    %v254 = vpop.trf.xlu0
    %v255 = vpop.trf.xlu0
    %v256 = vpop.trf.xlu0
    %v257 = vpop.trf.xlu0
    %v259 = vsel %vm120, %v250, 0
    %v262 = vsel %vm120, %v251, 0
    %v265 = vsel %vm120, %v252, 0
    %v268 = vsel %vm120, %v253, 0
    %v271 = vsel %vm120, %v254, 0
    %v274 = vsel %vm120, %v255, 0
    %v277 = vsel %vm120, %v256, 0
    %v280 = vsel %vm120, %v257, 0
    %282 = vmatprep.subr.bf16.mxu0 0
    %283 = vmatpush1.bf16.msra.mxu0 0
    %284 = vmatprep.subr.bf16.mxu0 0
    %285 = vmatpush1.bf16.msra.mxu0 0
    %286 = vmatprep.subr.bf16.mxu0 0
    %287 = vmatpush1.bf16.msra.mxu0 0
    %288 = vmatprep.subr.bf16.mxu0 0
    %289 = vmatpush1.bf16.msra.mxu0 0
    %290 = vmatprep.subr.bf16.mxu0 0
    %291 = vmatpush1.bf16.msra.mxu0 0
    %292 = vmatprep.subr.bf16.mxu0 0
    %293 = vmatpush1.bf16.msra.mxu0 0
    %294 = vmatprep.subr.bf16.mxu0 0
    %295 = vmatpush1.bf16.msra.mxu0 %v103
    %296 = vmatprep.subr.bf16.mxu0 0
    %297 = vmatpush1.bf16.msra.mxu0 %v102
    %298 = vmatprep.subr.bf16.mxu0 0
    %299 = vmatpush2.bf16.msra.mxu0 0
    %300 = vmatprep.subr.bf16.mxu0 0
    %301 = vmatpush2.bf16.msra.mxu0 0
    %302 = vmatprep.subr.bf16.mxu0 0
    %303 = vmatpush2.bf16.msra.mxu0 0
    %304 = vmatprep.subr.bf16.mxu0 0
    %305 = vmatpush2.bf16.msra.mxu0 0
    %306 = vmatprep.subr.bf16.mxu0 0
    %307 = vmatpush2.bf16.msra.mxu0 0
    %308 = vmatprep.subr.bf16.mxu0 0
    %309 = vmatpush2.bf16.msra.mxu0 0
    %310 = vmatprep.subr.bf16.mxu0 0
    %311 = vmatpush2.bf16.msra.mxu0 0
    %312 = vmatprep.subr.bf16.mxu0 0
    %313 = vmatpush2.bf16.msra.mxu0 0
    %314 = vmatprep.mubr.bf16.mxu0 0
    %315 = vmatmul.mubr.bf16.gmra.mxu0 %v259
    %v316 = vpop.f32.mrf.mxu0
    %v317 = vadd.f32 0.0, %v316
    %v318 = vpop.f32.mrf.mxu0
    %v319 = vpop.f32.mrf.mxu0
    %v320 = vadd.f32 0.0, %v319
    %v321 = vpop.f32.mrf.mxu0
    %322 = vmatprep.mubr.bf16.mxu0 0
    %323 = vmatmul.mubr.bf16.gmra.mxu0 %v262
    %v324 = vpop.f32.mrf.mxu0
    %v325 = vadd.f32 0.0, %v324
    %v326 = vpop.f32.mrf.mxu0
    %v327 = vpop.f32.mrf.mxu0
    %v328 = vadd.f32 0.0, %v327
    %v329 = vpop.f32.mrf.mxu0
    %330 = vmatprep.mubr.bf16.mxu0 0
    %331 = vmatmul.mubr.bf16.gmra.mxu0 %v265
    %v332 = vpop.f32.mrf.mxu0
    %v333 = vadd.f32 0.0, %v332
    %v334 = vpop.f32.mrf.mxu0
    %v335 = vpop.f32.mrf.mxu0
    %v336 = vadd.f32 0.0, %v335
    %v337 = vpop.f32.mrf.mxu0
    %338 = vmatprep.mubr.bf16.mxu0 0
    %339 = vmatmul.mubr.bf16.gmra.mxu0 %v268
    %v340 = vpop.f32.mrf.mxu0
    %v341 = vadd.f32 0.0, %v340
    %v342 = vpop.f32.mrf.mxu0
    %v343 = vpop.f32.mrf.mxu0
    %v344 = vadd.f32 0.0, %v343
    %v345 = vpop.f32.mrf.mxu0
    %346 = vmatprep.mubr.bf16.mxu0 0
    %347 = vmatmul.mubr.bf16.gmra.mxu0 %v271
    %v348 = vpop.f32.mrf.mxu0
    %v349 = vadd.f32 0.0, %v348
    %v350 = vpop.f32.mrf.mxu0
    %v351 = vpop.f32.mrf.mxu0
    %v352 = vadd.f32 0.0, %v351
    %v353 = vpop.f32.mrf.mxu0
    %354 = vmatprep.mubr.bf16.mxu0 0
    %355 = vmatmul.mubr.bf16.gmra.mxu0 %v274
    %v356 = vpop.f32.mrf.mxu0
    %v357 = vadd.f32 0.0, %v356
    %v358 = vpop.f32.mrf.mxu0
    %v359 = vpop.f32.mrf.mxu0
    %v360 = vadd.f32 0.0, %v359
    %v361 = vpop.f32.mrf.mxu0
    %362 = vmatprep.mubr.bf16.mxu0 0
    %363 = vmatmul.mubr.bf16.gmra.mxu0 %v277
    %v364 = vpop.f32.mrf.mxu0
    %v365 = vadd.f32 0.0, %v364
    %v366 = vpop.f32.mrf.mxu0
    %v367 = vpop.f32.mrf.mxu0
    %v368 = vadd.f32 0.0, %v367
    %v369 = vpop.f32.mrf.mxu0
    %370 = vmatprep.mubr.bf16.mxu0 0
    %371 = vmatmul.mubr.bf16.gmra.mxu0 %v280
    %v372 = vpop.f32.mrf.mxu0
    %v373 = vadd.f32 0.0, %v372
    %v374 = vpop.f32.mrf.mxu0
    %v375 = vpop.f32.mrf.mxu0
    %v376 = vadd.f32 0.0, %v375
    %v377 = vpop.f32.mrf.mxu0
    %378 = vdwg.mxu0
    %v379 = vmul.f32 %v180, 0.0078125
    %v380 = vmul.f32 %v183, 0.0078125
    %v381 = vmul.f32 %v188, 0.0078125
    %v382 = vmul.f32 %v191, 0.0078125
    %v383 = vmul.f32 %v196, 0.0078125
    %v384 = vmul.f32 %v199, 0.0078125
    %v385 = vmul.f32 %v204, 0.0078125
    %v386 = vmul.f32 %v207, 0.0078125
    %v387 = vmul.f32 %v212, 0.0078125
    %v388 = vmul.f32 %v215, 0.0078125
    %v389 = vmul.f32 %v220, 0.0078125
    %v390 = vmul.f32 %v223, 0.0078125
    %v391 = vmul.f32 %v228, 0.0078125
    %v392 = vmul.f32 %v231, 0.0078125
    %v393 = vmul.f32 %v236, 0.0078125
    %v394 = vmul.f32 %v239, 0.0078125
    %v395 = vmul.f32 %v317, 0.0078125
    %v396 = vmul.f32 %v320, 0.0078125
    %v397 = vmul.f32 %v325, 0.0078125
    %v398 = vmul.f32 %v328, 0.0078125
    %v399 = vmul.f32 %v333, 0.0078125
    %v400 = vmul.f32 %v336, 0.0078125
    %v401 = vmul.f32 %v341, 0.0078125
    %v402 = vmul.f32 %v344, 0.0078125
    %v403 = vmul.f32 %v349, 0.0078125
    %v404 = vmul.f32 %v352, 0.0078125
    %v405 = vmul.f32 %v357, 0.0078125
    %v406 = vmul.f32 %v360, 0.0078125
    %v407 = vmul.f32 %v365, 0.0078125
    %v408 = vmul.f32 %v368, 0.0078125
    %v409 = vmul.f32 %v373, 0.0078125
    %v410 = vmul.f32 %v376, 0.0078125
    %411 = vst [vmem:[#allocation7] sm:$0xff] %v379
    %412 = vst [vmem:[#allocation7 + $0x8] sm:$0xff] %v380
    %413 = vst [vmem:[#allocation7 + $0x10] sm:$0xff] %v381
    %414 = vst [vmem:[#allocation7 + $0x18] sm:$0xff] %v382
    %415 = vst [vmem:[#allocation7 + $0x20] sm:$0xff] %v383
    %416 = vst [vmem:[#allocation7 + $0x28] sm:$0xff] %v384
    %417 = vst [vmem:[#allocation7 + $0x30] sm:$0xff] %v385
    %418 = vst [vmem:[#allocation7 + $0x38] sm:$0xff] %v386
    %419 = vst [vmem:[#allocation7 + $0x40] sm:$0xff] %v387
    %420 = vst [vmem:[#allocation7 + $0x48] sm:$0xff] %v388
    %421 = vst [vmem:[#allocation7 + $0x50] sm:$0xff] %v389
    %422 = vst [vmem:[#allocation7 + $0x58] sm:$0xff] %v390
    %423 = vst [vmem:[#allocation7 + $0x60] sm:$0xff] %v391
    %424 = vst [vmem:[#allocation7 + $0x68] sm:$0xff] %v392
    %425 = vst [vmem:[#allocation7 + $0x70] sm:$0xff] %v393
    %426 = vst [vmem:[#allocation7 + $0x78] sm:$0xff] %v394
    %427 = vst [vmem:[#allocation7 + $0x80] sm:$0xff] %v395
    %428 = vst [vmem:[#allocation7 + $0x88] sm:$0xff] %v396
    %429 = vst [vmem:[#allocation7 + $0x90] sm:$0xff] %v397
    %430 = vst [vmem:[#allocation7 + $0x98] sm:$0xff] %v398
    %431 = vst [vmem:[#allocation7 + $0xa0] sm:$0xff] %v399
    %432 = vst [vmem:[#allocation7 + $0xa8] sm:$0xff] %v400
    %433 = vst [vmem:[#allocation7 + $0xb0] sm:$0xff] %v401
    %434 = vst [vmem:[#allocation7 + $0xb8] sm:$0xff] %v402
    %435 = vst [vmem:[#allocation7 + $0xc0] sm:$0xff] %v403
    %436 = vst [vmem:[#allocation7 + $0xc8] sm:$0xff] %v404
    %437 = vst [vmem:[#allocation7 + $0xd0] sm:$0xff] %v405
    %438 = vst [vmem:[#allocation7 + $0xd8] sm:$0xff] %v406
    %439 = vst [vmem:[#allocation7 + $0xe0] sm:$0xff] %v407
    %440 = vst [vmem:[#allocation7 + $0xe8] sm:$0xff] %v408
    %441 = vst [vmem:[#allocation7 + $0xf0] sm:$0xff] %v409
    %442 = vst [vmem:[#allocation7 + $0xf8] sm:$0xff] %v410
    // Predicated region
    $region22: #{tpu_custom_call.1} parent=1 // pred_check
      _
    $region23: #{tpu_custom_call.1} parent=1 // pred_check_branch
      %444 = sbr.rel (0) target = $region25
    $region24: #{tpu_custom_call.1} parent=1 // pred_region
      %s446 = ssub.s32 4096, 4096
      %447 = vsyncadd [#allocation4], %s446
      %s448 = sshll.u32 [#allocation7], 4
      %s449 = int_to_ptr.vmem [resolvable:$true] %s448
      %454 = dma.vmem_to_hbm [thread:$0]  %s449, 4096, %s3, [#allocation4], 128, 128, 8
    $region25: #{tpu_custom_call.1} parent=1 // pred_fallthru
      _
    // Predicated region
    $region26: #{tpu_custom_call.1} parent=1 // pred_check
      _
    $region27: #{tpu_custom_call.1} parent=1 // pred_check_branch
      %456 = sbr.rel (0) target = $region29
    $region28: #{tpu_custom_call.1} parent=1 // pred_region
      %457 = dma.done [#allocation4], 4096
    $region29: #{tpu_custom_call.1} parent=1 // pred_fallthru
      _
    %458 = vsyncpa [#allocation3], 1
    %459 = vsyncpa [#allocation6], 1
    %460 = vsyncpa [#allocation4], 1

</llo_original>
